<compile_context>
chip_gen: v7x
topology: tpu7x:2x2x1
jax: 0.10.0
libtpu: 0.0.40
codegen_flags: <defaults>
</compile_context>

<pallas_src>
import jax
import jax.numpy as jnp
from jax.experimental import pallas as pl
from jax.experimental.pallas import tpu as pltpu


# ----------------------------------------------------------------------------
# Faithful translation of nn.Identity: return the input tensor itself.
# Zero bytes moved, zero launch overhead.
# ----------------------------------------------------------------------------
def identity(x: jax.Array) -> jax.Array:
    """nn.Identity forward: return the input as-is (no kernel, no copy)."""
    return x


# ----------------------------------------------------------------------------
# Fresh-buffer identity: one (or a few concurrent) whole-array HBM->HBM DMAs.
# ----------------------------------------------------------------------------
def _identity_dma_whole_kernel(x_hbm, o_hbm, sem):
    # Single whole-array HBM->HBM DMA: no VMEM staging, no vector load/store.
    cp = pltpu.make_async_copy(x_hbm, o_hbm, sem)
    cp.start()
    cp.wait()


def _make_chunked_dma_kernel(num_chunks: int, chunk_rows: int):
    """Kernel that issues `num_chunks` concurrent contiguous row-chunk DMAs."""

    def kernel(x_hbm, o_hbm, sem):
        copies = []
        for i in range(num_chunks):  # static unroll; starts are Python ints
            start = i * chunk_rows   # contiguous, leading-dim-aligned slice
            cp = pltpu.make_async_copy(
                x_hbm.at[pl.ds(start, chunk_rows)],
                o_hbm.at[pl.ds(start, chunk_rows)],
                sem.at[i],
            )
            cp.start()
            copies.append(cp)
        # All DMAs are in flight; now drain them.
        for cp in copies:
            cp.wait()

    return kernel


def _default_num_chunks(x: jax.Array) -> int:
    """Pick a DMA chunk count from array size and device generation."""
    nbytes = x.size * x.dtype.itemsize
    if x.ndim == 0 or x.shape[0] <= 1:
        return 1
    # Small/medium tensors: one descriptor already reaches the copy roofline.
    if nbytes < 8 * 1024 * 1024:
        return 1
    try:
        kind = jax.devices()[0].device_kind.lower()
    except Exception:  # pragma: no cover - defensive; default to no chunking
        kind = ""
    if "v5" in kind:
        # v5e's ~0.82 TB/s HBM is saturated by one DMA except for huge arrays.
        if nbytes < 64 * 1024 * 1024:
            return 1
        target = 2
    elif "v7" in kind:
        target = 8  # multiple outstanding DMAs needed to feed ~3.2 TB/s HBM
    else:
        target = 4  # v6e: modest win on multi-MiB arrays
    lead = x.shape[0]
    # Largest chunk count <= target that evenly divides the leading dim, so
    # every chunk is a contiguous, equally-sized row block (one descriptor).
    for c in range(min(target, lead), 0, -1):
        if lead % c == 0:
            return c
    return 1


def identity_copy(x: jax.Array, *, num_chunks: int | None = None) -> jax.Array:
    """Pallas identity that returns a fresh buffer via HBM->HBM DMA(s)."""
    nbytes = x.size * x.dtype.itemsize
    if num_chunks is None:
        num_chunks = _default_num_chunks(x)

    if num_chunks <= 1 or x.ndim == 0 or x.shape[0] % num_chunks != 0:
        kernel = _identity_dma_whole_kernel
        scratch = [pltpu.SemaphoreType.DMA(())]
    else:
        chunk_rows = x.shape[0] // num_chunks
        kernel = _make_chunked_dma_kernel(num_chunks, chunk_rows)
        scratch = [pltpu.SemaphoreType.DMA((num_chunks,))]

    return pl.pallas_call(
        kernel,
        out_shape=jax.ShapeDtypeStruct(x.shape, x.dtype),
        in_specs=[pl.BlockSpec(memory_space=pl.ANY)],
        out_specs=pl.BlockSpec(memory_space=pl.ANY),
        scratch_shapes=scratch,
        cost_estimate=pl.CostEstimate(
            flops=0, transcendentals=0, bytes_accessed=2 * nbytes
        ),
    )(x)


if __name__ == "__main__":
    key = jax.random.PRNGKey(0)

    # --- nn.Identity forward semantics: y = x ------------------------------
    shape, dtype = (2, 4, 16, 16), jnp.float32
    x = jax.random.normal(key, shape, dtype=dtype)

    y = identity(x)
    jax.block_until_ready(y)
    assert y.shape == shape
    assert y.dtype == dtype
    assert bool(jnp.all(y == x))

    # --- Fresh-buffer variant, single-DMA path (small tensor) --------------
    y_copy = identity_copy(x)
    jax.block_until_ready(y_copy)
    assert y_copy.shape == shape
    assert y_copy.dtype == dtype
    assert bool(jnp.all(y_copy == x))

    # --- Fresh-buffer variant, chunked concurrent-DMA path (forced) --------
    x2 = jax.random.normal(jax.random.PRNGKey(1), (8, 128, 128), jnp.float32)
    y2 = identity_copy(x2, num_chunks=4)
    jax.block_until_ready(y2)
    assert y2.shape == x2.shape
    assert y2.dtype == x2.dtype
    assert bool(jnp.all(y2 == x2))

    print("KERNEL_OK")
</pallas_src>

<mosaic_0001>
module attributes {stable_mosaic.version = 11 : i64} {
  func.func @_identity_dma_whole_kernel(%arg0: memref<2x4x16x16xf32, #tpu.memory_space<any>>, %arg1: memref<2x4x16x16xf32, #tpu.memory_space<any>>, %arg2: memref<!tpu.dma_semaphore, #tpu.memory_space<semaphore_mem>>) attributes {dimension_semantics = [], scalar_prefetch = 0 : i64, scratch_operands = 1 : i64, tpu.core_type = #tpu.core_type<tc>} {
    tpu.enqueue_dma source(%arg0 : memref<2x4x16x16xf32, #tpu.memory_space<any>>) target(%arg1 : memref<2x4x16x16xf32, #tpu.memory_space<any>>) target_semaphore(%arg2 : memref<!tpu.dma_semaphore, #tpu.memory_space<semaphore_mem>>)
    tpu.wait_dma2 semaphore(%arg2 : memref<!tpu.dma_semaphore, #tpu.memory_space<semaphore_mem>>) src(%arg0 : memref<2x4x16x16xf32, #tpu.memory_space<any>>) dst(%arg1 : memref<2x4x16x16xf32, #tpu.memory_space<any>>)
    return
  }
}

</mosaic_0001>

<llo_original>
// kernel: tpu_custom_call.1
$region0: #{tpu_custom_call.1}
  #allocation0 [shape = 'u32[]', space=smem, size = 0x4, offset = 0x4, fixed_abs, tag = 'smem constant byte address 0x4 - core index']
  #allocation1 [shape = 'u32[144,128]{1,0:T(1,128)}', space=vmem, size = 0x12000, scoped, tag = 'internal scratch']
  #allocation2 [shape = 's32[1]{0}', space=sflag, size = 0x4, scoped, tag = 'scratch operand']
  #allocation3 [shape = 's32[]', space=sflag, size = 0x4, offset = 0, fixed_abs, tag = 'sflag constant byte address 0x0 - dummy sync flag']
  #allocation4 [shape = 'u32[0]{0}', space=smem, size = 0, offset = 0, fixed_abs, tag = 'smem constant byte address 0x0 - null']
  %s0 = inlined_call_operand.hbm [shape: f32[2,4,16,16], index: 0, kind: input, shape index: {}]
  %s1 = inlined_call_operand.hbm [shape: f32[2,4,16,16], index: 1, kind: output, shape index: {}]
  %s2 = sld [smem:[#allocation0]]
  $region2: #{tpu_custom_call.1} parent=0
    _
  %s4 = ssub.s32 1, %s2
  %s5 = scalar_select 0, %s4, %s2
  %s7 = sshll.u32 1, 14
  %s8 = sxor.u32 4294967295, %s7
  %s11 = sshll.u32 3, 24
  %s12 = sxor.u32 4294967295, %s11
  %s13 = sand.u32 0, %s12
  %s15 = sor.u32 %s13, 0
  %18 = dma.general %s0, 2048, %s1, [#allocation2], [#allocation3], [#allocation4], %s15, 0
  %s19 = smul.u32 2, 4
  %s20 = smul.u32 %s19, 16
  %s21 = smul.u32 %s20, 1
  %s22 = sshll.u32 %s21, 4
  %23 = dma.done [#allocation2], %s22
  %24 = vsyncmov [#allocation2]
  %s25 = vpop.sfrf %24
  %p26 = scmp.eq.s32.totalorder %s25, 0
  %p27 = pneg %p26
  %29 = shalt.err (%p27)

</llo_original>
